<compile_context>
chip_gen: v6e
topology: v6e:2x2x1
jax: 0.10.0
libtpu: 0.0.40
codegen_flags: <defaults>
</compile_context>

<pallas_src>
import jax
import jax.numpy as jnp
from jax.experimental import pallas as pl
from jax.experimental.pallas import tpu as pltpu


def _round_up(x, n):
    return (x + n - 1) // n * n


def mlp_kernel(x_ref, w1_ref, b1_ref, w2_ref, b2_ref, o_ref):
    # x_ref : (TB, d_in) bf16/f32  -- one batch tile (pipelined)
    # w1_ref: (d_in, m)  bf16/f32  -- VMEM-resident across all tiles
    # b1_ref: (1, m)     f32
    # w2_ref: (1, m)     f32       -- layer2 weight as a row
    # b2_ref: (1, 1)     f32       -- SMEM scalar
    # o_ref : (1, TB)    f32       -- lane-dense output row for this tile
    h = jnp.dot(x_ref[...], w1_ref[...], preferred_element_type=jnp.float32)
    h = jnp.maximum(h + b1_ref[...], 0.0)                      # (TB, m) f32, VPU

    # Second layer has a single output feature: elementwise multiply (VPU) +
    # lane reduction (XLU) instead of an N=1 MXU matmul.
    y = jnp.sum(h * w2_ref[...], axis=-1) + b2_ref[0, 0]       # (TB,)
    o_ref[...] = y[None, :].astype(o_ref.dtype)                # (1, TB) dense store


def mlp_forward(x, w1, b1, w2, b2, *, block_b=512, use_bf16=True):
    """Computes relu(x @ w1 + b1) @ w2.T + b2 with one pallas_call. Returns (B, 1) f32."""
    B, d_in = x.shape
    m = w1.shape[1]

    # Batch tile: multiple of 128 so the per-tile output row is lane-dense and the
    # f32/bf16 sublane constraints are satisfied; cap at block_b (VMEM-friendly on
    # v7x's 64 MiB as well as v5e/v6e's 128 MiB).
    TB = min(_round_up(block_b, 128), _round_up(B, 128))
    B_pad = _round_up(B, TB)
    num_tiles = B_pad // TB
    if B_pad != B:
        x = jnp.pad(x, ((0, B_pad - B), (0, 0)))

    # Halve the dominant HBM stream with bf16 inputs; accumulation stays f32 in-kernel.
    in_dtype = jnp.bfloat16 if use_bf16 else jnp.float32
    x_in = x.astype(in_dtype)
    w1_in = w1.astype(in_dtype)
    b1 = b1.astype(jnp.float32)
    w2 = w2.astype(jnp.float32)
    b2 = b2.astype(jnp.float32)

    out = pl.pallas_call(
        mlp_kernel,
        out_shape=jax.ShapeDtypeStruct((num_tiles, TB), jnp.float32),
        grid=(num_tiles,),
        in_specs=[
            pl.BlockSpec((TB, d_in), lambda i: (i, 0)),        # x: per-tile, pipelined
            pl.BlockSpec((d_in, m), lambda i: (0, 0)),          # w1: resident
            pl.BlockSpec((1, m), lambda i: (0, 0)),              # b1: resident
            pl.BlockSpec((1, m), lambda i: (0, 0)),              # w2 row: resident
            pl.BlockSpec(memory_space=pltpu.MemorySpace.SMEM),   # b2 scalar in SMEM
        ],
        out_specs=pl.BlockSpec((1, TB), lambda i: (i, 0)),       # lane-dense row per tile
        compiler_params=pltpu.CompilerParams(
            dimension_semantics=("parallel",),   # shard batch tiles across TCs on v7x
            vmem_limit_bytes=32 * 1024 * 1024,
        ),
    )(x_in, w1_in, b1, w2, b2)

    # (num_tiles, TB) rows are contiguous batch chunks -> flatten and drop padding.
    return out.reshape(B_pad, 1)[:B]


def init_params(key, d_in=10, m=1024):
    # PyTorch nn.Linear default init: U(-1/sqrt(fan_in), 1/sqrt(fan_in)) for W and b.
    k1, k2, k3, k4 = jax.random.split(key, 4)
    bound1 = 1.0 / (d_in ** 0.5)
    bound2 = 1.0 / (m ** 0.5)
    w1 = jax.random.uniform(k1, (d_in, m), jnp.float32, -bound1, bound1)  # layer1.weight.T
    b1 = jax.random.uniform(k2, (1, m), jnp.float32, -bound1, bound1)
    w2 = jax.random.uniform(k3, (1, m), jnp.float32, -bound2, bound2)     # layer2.weight
    b2 = jax.random.uniform(k4, (1, 1), jnp.float32, -bound2, bound2)
    return w1, b1, w2, b2


if __name__ == "__main__":
    key = jax.random.PRNGKey(0)
    kx, kp = jax.random.split(key)

    B, d_in, m = 8, 10, 1024          # module default hidden width, small batch
    x = jax.random.normal(kx, (B, d_in), jnp.float32)
    w1, b1, w2, b2 = init_params(kp, d_in=d_in, m=m)

    out = mlp_forward(x, w1, b1, w2, b2)
    out = jax.block_until_ready(out)

    # correctness check against plain-JAX f32 reference (looser tol: bf16 inputs)
    ref = jnp.maximum(x @ w1 + b1, 0.0) @ w2.T + b2
    assert out.shape == (B, 1)
    assert jnp.allclose(out, ref, atol=2e-2, rtol=2e-2), (out, ref)

    print("KERNEL_OK")
</pallas_src>

<mosaic_0001>
module attributes {stable_mosaic.version = 11 : i64} {
  func.func @mlp_kernel(%arg0: i32, %arg1: memref<128x10xbf16, #tpu.memory_space<vmem>>, %arg2: memref<10x1024xbf16, #tpu.memory_space<vmem>>, %arg3: memref<1x1024xf32, #tpu.memory_space<vmem>>, %arg4: memref<1x1024xf32, #tpu.memory_space<vmem>>, %arg5: memref<1x1xf32, #tpu.memory_space<smem>>, %arg6: memref<1x128xf32, #tpu.memory_space<vmem>>) attributes {dimension_semantics = [#tpu.dimension_semantics<parallel>], iteration_bounds = array<i64: 1>, scalar_prefetch = 0 : i64, scratch_operands = 0 : i64, tpu.core_type = #tpu.core_type<tc>, window_params = [{transform_indices = @transform_0, window_bounds = array<i64: 128, 10>}, {pipeline_mode = #tpu.pipeline_mode<synchronous>, transform_indices = @transform_1, window_bounds = array<i64: 10, 1024>}, {pipeline_mode = #tpu.pipeline_mode<synchronous>, transform_indices = @transform_2, window_bounds = array<i64: 1, 1024>}, {pipeline_mode = #tpu.pipeline_mode<synchronous>, transform_indices = @transform_3, window_bounds = array<i64: 1, 1024>}, {transform_indices = @transform_4, window_bounds = array<i64: 1, 1>}, {transform_indices = @transform_5, window_bounds = array<i64: 1, 128>}]} {
    %c0 = arith.constant 0 : index
    %c0_0 = arith.constant 0 : index
    %0 = vector.load %arg1[%c0, %c0_0] : memref<128x10xbf16, #tpu.memory_space<vmem>>, vector<128x10xbf16>
    %c0_1 = arith.constant 0 : index
    %c0_2 = arith.constant 0 : index
    %1 = vector.load %arg2[%c0_1, %c0_2] : memref<10x1024xbf16, #tpu.memory_space<vmem>>, vector<10x1024xbf16>
    %cst = arith.constant dense<0.000000e+00> : vector<128x1024xf32>
    %2 = tpu.matmul %0, %1, %cst {dimension_numbers = #tpu.dot_dimension_numbers<[1], [0], [0], [1], [0, 0, 1, 1], [], []>} : vector<128x10xbf16>, vector<10x1024xbf16>, vector<128x1024xf32> -> vector<128x1024xf32>
    %c0_3 = arith.constant 0 : index
    %c0_4 = arith.constant 0 : index
    %3 = vector.load %arg3[%c0_3, %c0_4] : memref<1x1024xf32, #tpu.memory_space<vmem>>, vector<1x1024xf32>
    %4 = vector.broadcast %3 : vector<1x1024xf32> to vector<128x1024xf32>
    %5 = arith.addf %2, %4 : vector<128x1024xf32>
    %cst_5 = arith.constant 0.000000e+00 : f32
    %6 = vector.broadcast %cst_5 : f32 to vector<128x1024xf32>
    %7 = arith.maximumf %5, %6 : vector<128x1024xf32>
    %c0_6 = arith.constant 0 : index
    %c0_7 = arith.constant 0 : index
    %8 = vector.load %arg4[%c0_6, %c0_7] : memref<1x1024xf32, #tpu.memory_space<vmem>>, vector<1x1024xf32>
    %9 = vector.broadcast %8 : vector<1x1024xf32> to vector<128x1024xf32>
    %10 = arith.mulf %7, %9 : vector<128x1024xf32>
    %cst_8 = arith.constant dense<0.000000e+00> : vector<128xf32>
    %11 = vector.multi_reduction <add>, %10, %cst_8 [1] : vector<128x1024xf32> to vector<128xf32>
    %c0_9 = arith.constant 0 : index
    %c0_10 = arith.constant 0 : index
    %12 = memref.load %arg5[%c0_9, %c0_10] : memref<1x1xf32, #tpu.memory_space<smem>>
    %13 = vector.broadcast %12 : f32 to vector<128xf32>
    %14 = arith.addf %11, %13 : vector<128xf32>
    %15 = vector.shape_cast %14 : vector<128xf32> to vector<1x128xf32>
    %c0_11 = arith.constant 0 : index
    %c0_12 = arith.constant 0 : index
    %16 = vector.load %arg6[%c0_11, %c0_12] : memref<1x128xf32, #tpu.memory_space<vmem>>, vector<1x128xf32>
    tpu.vector_store %arg6[%c0_11, %c0_12], %15 {strides = array<i32>} : memref<1x128xf32, #tpu.memory_space<vmem>>, vector<1x128xf32>,
    return
  }
  func.func @transform_0(%arg0: i32) -> (i32, i32) {
    %c0_i32 = arith.constant 0 : i32
    %c0_i32_0 = arith.constant 0 : i32
    return %arg0, %c0_i32 : i32, i32
  }
  func.func @transform_1(%arg0: i32) -> (i32, i32) {
    %c0_i32 = arith.constant 0 : i32
    %c0_i32_0 = arith.constant 0 : i32
    %c0_i32_1 = arith.constant 0 : i32
    return %c0_i32, %c0_i32_0 : i32, i32
  }
  func.func @transform_2(%arg0: i32) -> (i32, i32) {
    %c0_i32 = arith.constant 0 : i32
    %c0_i32_0 = arith.constant 0 : i32
    %c0_i32_1 = arith.constant 0 : i32
    return %c0_i32, %c0_i32_0 : i32, i32
  }
  func.func @transform_3(%arg0: i32) -> (i32, i32) {
    %c0_i32 = arith.constant 0 : i32
    %c0_i32_0 = arith.constant 0 : i32
    %c0_i32_1 = arith.constant 0 : i32
    return %c0_i32, %c0_i32_0 : i32, i32
  }
  func.func @transform_4(%arg0: i32) -> (i32, i32) {
    %c0_i32 = arith.constant 0 : i32
    %c0_i32_0 = arith.constant 0 : i32
    %c0_i32_1 = arith.constant 0 : i32
    return %c0_i32, %c0_i32_0 : i32, i32
  }
  func.func @transform_5(%arg0: i32) -> (i32, i32) {
    %c0_i32 = arith.constant 0 : i32
    %c0_i32_0 = arith.constant 0 : i32
    return %arg0, %c0_i32 : i32, i32
  }
}

</mosaic_0001>

<llo_original>
// kernel: tpu_custom_call.1
$region0: #{tpu_custom_call.1}
  #allocation0 [shape = 'u32[]', space=smem, size = 0x4, offset = 0x4, fixed_abs, tag = 'smem constant byte address 0x4 - core index']
  #allocation1 [shape = 'u32[144,128]{1,0:T(1,128)}', space=vmem, size = 0x12000, scoped, tag = 'internal scratch']
  #allocation2 [shape = 'f32[1,1]{1,0:T(1,128)S(6)}', space=smem, size = 0x200, scoped, tag = 'scoped memory for tpu_custom_call.1']
  %s0 = inlined_call_operand.vmem [shape: bf16[128,10], index: 0, kind: input, shape index: {}]
  %s1 = inlined_call_operand.vmem [shape: bf16[10,1024], index: 1, kind: input, shape index: {}]
  %s2 = inlined_call_operand.vmem [shape: f32[1,1024], index: 2, kind: input, shape index: {}]
  %s3 = inlined_call_operand.hbm [shape: f32[1,1024], index: 3, kind: input, shape index: {}]
  %s4 = inlined_call_operand.<no memory space> [shape: f32[1,1], index: 4, kind: input, shape index: {}]
  %s5 = inlined_call_operand.hbm [shape: f32[1,128], index: 5, kind: output, shape index: {}]
  %s6 = sld [smem:[#allocation0]]
  $region34: #{tpu_custom_call.1} parent=0
    _
  %s8 = ssub.s32 1, %s6
  %s9 = scalar_select 0, %s8, %s6
  %10 = sst [smem:[#allocation2]] %s4
  $region1: #{tpu_custom_call.1} parent=0
    #allocation3 [shape = 'u8[4096]{0}', space=vmem, size = 0x1000, scoped, tag = 'input window, operand 3, single buffered']
    #allocation4 [shape = 's32[1]{0}', space=sflag, size = 0x4, scoped, tag = 'scoped memory for tpu_custom_call.1']
    #allocation5 [shape = 's32[1]{0}', space=sflag, size = 0x4, scoped, tag = 'scoped memory for tpu_custom_call.1']
    #allocation6 [shape = 'u8[512]{0}', space=vmem, size = 0x400, scoped, tag = 'output window, operand 0, single buffered']
    %11 = vsyncpa [#allocation4], 0
    %12 = vsyncpa [#allocation5], 0
    // Predicated region
    $region2: #{tpu_custom_call.1} parent=1 // pred_check
      _
    $region3: #{tpu_custom_call.1} parent=1 // pred_check_branch
      %14 = sbr.rel (0) target = $region5
    $region4: #{tpu_custom_call.1} parent=1 // pred_region
      _
    $region5: #{tpu_custom_call.1} parent=1 // pred_fallthru
      _
    // Predicated region
    $region6: #{tpu_custom_call.1} parent=1 // pred_check
      _
    $region7: #{tpu_custom_call.1} parent=1 // pred_check_branch
      %16 = sbr.rel (0) target = $region9
    $region8: #{tpu_custom_call.1} parent=1 // pred_region
      _
    $region9: #{tpu_custom_call.1} parent=1 // pred_fallthru
      _
    // Predicated region
    $region10: #{tpu_custom_call.1} parent=1 // pred_check
      _
    $region11: #{tpu_custom_call.1} parent=1 // pred_check_branch
      %18 = sbr.rel (0) target = $region13
    $region12: #{tpu_custom_call.1} parent=1 // pred_region
      _
    $region13: #{tpu_custom_call.1} parent=1 // pred_fallthru
      _
    // Predicated region
    $region14: #{tpu_custom_call.1} parent=1 // pred_check
      _
    $region15: #{tpu_custom_call.1} parent=1 // pred_check_branch
      %20 = sbr.rel (0) target = $region17
    $region16: #{tpu_custom_call.1} parent=1 // pred_region
      %s22 = ssub.s32 128, 128
      %23 = vsyncadd [#allocation4], %s22
      %s25 = sshll.u32 [#allocation3], 4
      %s26 = int_to_ptr.vmem [resolvable:$true] %s25
      %28 = dma.hbm_to_vmem [thread:$0]  %s3, 128, %s26, [#allocation4]
    $region17: #{tpu_custom_call.1} parent=1 // pred_fallthru
      _
    // Predicated region
    $region18: #{tpu_custom_call.1} parent=1 // pred_check
      _
    $region19: #{tpu_custom_call.1} parent=1 // pred_check_branch
      %30 = sbr.rel (0) target = $region21
    $region20: #{tpu_custom_call.1} parent=1 // pred_region
      _
    $region21: #{tpu_custom_call.1} parent=1 // pred_fallthru
      _
    // Predicated region
    $region22: #{tpu_custom_call.1} parent=1 // pred_check
      _
    $region23: #{tpu_custom_call.1} parent=1 // pred_check_branch
      %32 = sbr.rel (0) target = $region25
    $region24: #{tpu_custom_call.1} parent=1 // pred_region
      %33 = dma.done [#allocation4], 128
    $region25: #{tpu_custom_call.1} parent=1 // pred_fallthru
      _
    %v35 = vld [vmem:[%s0] sm:$0xf]
    %v36 = vld [vmem:[%s0 + $0x4] sm:$0xf]
    %v37 = vld [vmem:[%s0 + $0x8] sm:$0xf]
    %v38 = vld [vmem:[%s0 + $0xc] sm:$0xf]
    %v39 = vld [vmem:[%s0 + $0x10] sm:$0xf]
    %v40 = vld [vmem:[%s0 + $0x14] sm:$0xf]
    %v41 = vld [vmem:[%s0 + $0x18] sm:$0xf]
    %v42 = vld [vmem:[%s0 + $0x1c] sm:$0xf]
    %v43 = vld [vmem:[%s0 + $0x20] sm:$0xf]
    %v44 = vld [vmem:[%s0 + $0x24] sm:$0xf]
    %v45 = vld [vmem:[%s0 + $0x28] sm:$0xf]
    %v46 = vld [vmem:[%s0 + $0x2c] sm:$0xf]
    %v47 = vld [vmem:[%s0 + $0x30] sm:$0xf]
    %v48 = vld [vmem:[%s0 + $0x34] sm:$0xf]
    %v49 = vld [vmem:[%s0 + $0x38] sm:$0xf]
    %v50 = vld [vmem:[%s0 + $0x3c] sm:$0xf]
    %v51 = vld [vmem:[%s1] sm:$0xff]
    %v52 = vld [vmem:[%s1 + $0x8] sm:$0xff]
    %v53 = vld [vmem:[%s1 + $0x10] sm:$0xff]
    %v54 = vld [vmem:[%s1 + $0x18] sm:$0xff]
    %v55 = vld [vmem:[%s1 + $0x20] sm:$0x11]
    %v56 = vld [vmem:[%s1 + $0x28] sm:$0x11]
    %v57 = vld [vmem:[%s1 + $0x30] sm:$0x11]
    %v58 = vld [vmem:[%s1 + $0x38] sm:$0x11]
    %v59 = vld [vmem:[%s2] sm:$0xff]
    %v61 = vlaneseq
    %v62 = vshrl.u32 %v61, 7
    %v63 = vsub.s32 0, %v62
    %v64 = vrot.slane %v59, %v63
    %v65 = vlaneseq
    %v66 = vshrl.u32 %v65, 7
    %v67 = vsub.s32 1, %v66
    %v68 = vrot.slane %v59, %v67
    %v69 = vlaneseq
    %v70 = vshrl.u32 %v69, 7
    %v71 = vsub.s32 2, %v70
    %v72 = vrot.slane %v59, %v71
    %v73 = vlaneseq
    %v74 = vshrl.u32 %v73, 7
    %v75 = vsub.s32 3, %v74
    %v76 = vrot.slane %v59, %v75
    %v77 = vlaneseq
    %v78 = vshrl.u32 %v77, 7
    %v79 = vsub.s32 4, %v78
    %v80 = vrot.slane %v59, %v79
    %v81 = vlaneseq
    %v82 = vshrl.u32 %v81, 7
    %v83 = vsub.s32 5, %v82
    %v84 = vrot.slane %v59, %v83
    %v85 = vlaneseq
    %v86 = vshrl.u32 %v85, 7
    %v87 = vsub.s32 6, %v86
    %v88 = vrot.slane %v59, %v87
    %v89 = vlaneseq
    %v90 = vshrl.u32 %v89, 7
    %v91 = vsub.s32 7, %v90
    %v92 = vrot.slane %v59, %v91
    %v117 = vunpack.c.l.b16 %v35
    %v118 = vunpack.c.l.b16 %v36
    %v119 = vunpack.c.l.b16 %v37
    %v120 = vunpack.c.l.b16 %v38
    %v121 = vunpack.c.l.b16 %v39
    %v122 = vunpack.c.l.b16 %v40
    %v123 = vunpack.c.l.b16 %v41
    %v124 = vunpack.c.l.b16 %v42
    %v125 = vunpack.c.l.b16 %v43
    %v126 = vunpack.c.l.b16 %v44
    %v127 = vunpack.c.l.b16 %v45
    %v128 = vunpack.c.l.b16 %v46
    %v129 = vunpack.c.l.b16 %v47
    %v130 = vunpack.c.l.b16 %v48
    %v131 = vunpack.c.l.b16 %v49
    %v132 = vunpack.c.l.b16 %v50
    %v133 = vpack.c.b16 %v118, %v117
    %v134 = vpack.c.b16 %v120, %v119
    %v135 = vpack.c.b16 %v122, %v121
    %v136 = vpack.c.b16 %v124, %v123
    %v137 = vpack.c.b16 %v126, %v125
    %v138 = vpack.c.b16 %v128, %v127
    %v139 = vpack.c.b16 %v130, %v129
    %v140 = vpack.c.b16 %v132, %v131
    %v149 = vunpack.c.l.b16 %v51
    %v150 = vunpack.c.h.b16 %v51
    %v151 = vunpack.c.l.b16 %v52
    %v152 = vunpack.c.h.b16 %v52
    %v153 = vunpack.c.l.b16 %v53
    %v154 = vunpack.c.h.b16 %v53
    %v155 = vunpack.c.l.b16 %v54
    %v156 = vunpack.c.h.b16 %v54
    %v157 = vunpack.c.l.b16 %v55
    %v158 = vunpack.c.h.b16 %v55
    %v159 = vunpack.c.l.b16 %v56
    %v160 = vunpack.c.h.b16 %v56
    %v161 = vunpack.c.l.b16 %v57
    %v162 = vunpack.c.h.b16 %v57
    %v163 = vunpack.c.l.b16 %v58
    %v164 = vunpack.c.h.b16 %v58
    %v165 = vpack.c.b16 %v157, %v149
    %v166 = vpack.c.b16 %v158, %v150
    %v167 = vpack.c.b16 %v159, %v151
    %v168 = vpack.c.b16 %v160, %v152
    %v169 = vpack.c.b16 %v161, %v153
    %v170 = vpack.c.b16 %v162, %v154
    %v171 = vpack.c.b16 %v163, %v155
    %v172 = vpack.c.b16 %v164, %v156
    %vm173 = vcmask 80896
    %v175 = vsel %vm173, %v133, 0
    %v178 = vsel %vm173, %v134, 0
    %v181 = vsel %vm173, %v135, 0
    %v184 = vsel %vm173, %v136, 0
    %v187 = vsel %vm173, %v137, 0
    %v190 = vsel %vm173, %v138, 0
    %v193 = vsel %vm173, %v139, 0
    %v196 = vsel %vm173, %v140, 0
    %vm198 = vcmask 1044480
    %v200 = vsel %vm198, %v165, 0
    %v203 = vsel %vm198, %v166, 0
    %v206 = vsel %vm198, %v167, 0
    %v209 = vsel %vm198, %v168, 0
    %v212 = vsel %vm198, %v169, 0
    %v215 = vsel %vm198, %v170, 0
    %v218 = vsel %vm198, %v171, 0
    %v221 = vsel %vm198, %v172, 0
    %223 = vmatprep.subr.bf16.mxu0 0
    %224 = vmatpush1.bf16.msra.mxu0 0
    %225 = vmatprep.subr.bf16.mxu0 0
    %226 = vmatpush1.bf16.msra.mxu0 0
    %227 = vmatprep.subr.bf16.mxu0 0
    %228 = vmatpush1.bf16.msra.mxu0 0
    %229 = vmatprep.subr.bf16.mxu0 0
    %230 = vmatpush1.bf16.msra.mxu0 0
    %231 = vmatprep.subr.bf16.mxu0 0
    %232 = vmatpush1.bf16.msra.mxu0 0
    %233 = vmatprep.subr.bf16.mxu0 0
    %234 = vmatpush1.bf16.msra.mxu0 0
    %235 = vmatprep.subr.bf16.mxu0 0
    %236 = vmatpush1.bf16.msra.mxu0 0
    %237 = vmatprep.subr.bf16.mxu0 %v203
    %238 = vmatpush1.bf16.msra.mxu0 %v200
    %239 = vmatprep.subr.bf16.mxu0 0
    %240 = vmatpush2.bf16.msra.mxu0 0
    %241 = vmatprep.subr.bf16.mxu0 0
    %242 = vmatpush2.bf16.msra.mxu0 0
    %243 = vmatprep.subr.bf16.mxu0 0
    %244 = vmatpush2.bf16.msra.mxu0 0
    %245 = vmatprep.subr.bf16.mxu0 0
    %246 = vmatpush2.bf16.msra.mxu0 0
    %247 = vmatprep.subr.bf16.mxu0 0
    %248 = vmatpush2.bf16.msra.mxu0 0
    %249 = vmatprep.subr.bf16.mxu0 0
    %250 = vmatpush2.bf16.msra.mxu0 0
    %251 = vmatprep.subr.bf16.mxu0 0
    %252 = vmatpush2.bf16.msra.mxu0 0
    %253 = vmatprep.subr.bf16.mxu0 0
    %254 = vmatpush2.bf16.msra.mxu0 0
    %255 = vmatprep.mubr.bf16.mxu0 0
    %256 = vmatmul.mubr.bf16.gmra.mxu0 %v175
    %v257 = vpop.f32.mrf.mxu0
    %v258 = vadd.f32 %v64, %v257
    %v259 = vpop.f32.mrf.mxu0
    %v260 = vadd.f32 %v68, %v259
    %v261 = vpop.f32.mrf.mxu0
    %v262 = vadd.f32 %v64, %v261
    %v263 = vpop.f32.mrf.mxu0
    %v264 = vadd.f32 %v68, %v263
    %265 = vmatprep.mubr.bf16.mxu0 0
    %266 = vmatmul.mubr.bf16.gmra.mxu0 %v178
    %v267 = vpop.f32.mrf.mxu0
    %v268 = vadd.f32 %v64, %v267
    %v269 = vpop.f32.mrf.mxu0
    %v270 = vadd.f32 %v68, %v269
    %v271 = vpop.f32.mrf.mxu0
    %v272 = vadd.f32 %v64, %v271
    %v273 = vpop.f32.mrf.mxu0
    %v274 = vadd.f32 %v68, %v273
    %275 = vmatprep.mubr.bf16.mxu0 0
    %276 = vmatmul.mubr.bf16.gmra.mxu0 %v181
    %v277 = vpop.f32.mrf.mxu0
    %v278 = vadd.f32 %v64, %v277
    %v279 = vpop.f32.mrf.mxu0
    %v280 = vadd.f32 %v68, %v279
    %v281 = vpop.f32.mrf.mxu0
    %v282 = vadd.f32 %v64, %v281
    %v283 = vpop.f32.mrf.mxu0
    %v284 = vadd.f32 %v68, %v283
    %285 = vmatprep.mubr.bf16.mxu0 0
    %286 = vmatmul.mubr.bf16.gmra.mxu0 %v184
    %v287 = vpop.f32.mrf.mxu0
    %v288 = vadd.f32 %v64, %v287
    %v289 = vpop.f32.mrf.mxu0
    %v290 = vadd.f32 %v68, %v289
    %v291 = vpop.f32.mrf.mxu0
    %v292 = vadd.f32 %v64, %v291
    %v293 = vpop.f32.mrf.mxu0
    %v294 = vadd.f32 %v68, %v293
    %295 = vmatprep.mubr.bf16.mxu0 0
    %296 = vmatmul.mubr.bf16.gmra.mxu0 %v187
    %v297 = vpop.f32.mrf.mxu0
    %v298 = vadd.f32 %v64, %v297
    %v299 = vpop.f32.mrf.mxu0
    %v300 = vadd.f32 %v68, %v299
    %v301 = vpop.f32.mrf.mxu0
    %v302 = vadd.f32 %v64, %v301
    %v303 = vpop.f32.mrf.mxu0
    %v304 = vadd.f32 %v68, %v303
    %305 = vmatprep.mubr.bf16.mxu0 0
    %306 = vmatmul.mubr.bf16.gmra.mxu0 %v190
    %v307 = vpop.f32.mrf.mxu0
    %v308 = vadd.f32 %v64, %v307
    %v309 = vpop.f32.mrf.mxu0
    %v310 = vadd.f32 %v68, %v309
    %v311 = vpop.f32.mrf.mxu0
    %v312 = vadd.f32 %v64, %v311
    %v313 = vpop.f32.mrf.mxu0
    %v314 = vadd.f32 %v68, %v313
    %315 = vmatprep.mubr.bf16.mxu0 0
    %316 = vmatmul.mubr.bf16.gmra.mxu0 %v193
    %v317 = vpop.f32.mrf.mxu0
    %v318 = vadd.f32 %v64, %v317
    %v319 = vpop.f32.mrf.mxu0
    %v320 = vadd.f32 %v68, %v319
    %v321 = vpop.f32.mrf.mxu0
    %v322 = vadd.f32 %v64, %v321
    %v323 = vpop.f32.mrf.mxu0
    %v324 = vadd.f32 %v68, %v323
    %325 = vmatprep.mubr.bf16.mxu0 0
    %326 = vmatmul.mubr.bf16.gmra.mxu0 %v196
    %v327 = vpop.f32.mrf.mxu0
    %v328 = vadd.f32 %v64, %v327
    %v329 = vpop.f32.mrf.mxu0
    %v330 = vadd.f32 %v68, %v329
    %v331 = vpop.f32.mrf.mxu0
    %v332 = vadd.f32 %v64, %v331
    %v333 = vpop.f32.mrf.mxu0
    %v334 = vadd.f32 %v68, %v333
    %335 = vdwg.mxu0
    %336 = vmatprep.subr.bf16.mxu0 0
    %337 = vmatpush1.bf16.msra.mxu0 0
    %338 = vmatprep.subr.bf16.mxu0 0
    %339 = vmatpush1.bf16.msra.mxu0 0
    %340 = vmatprep.subr.bf16.mxu0 0
    %341 = vmatpush1.bf16.msra.mxu0 0
    %342 = vmatprep.subr.bf16.mxu0 0
    %343 = vmatpush1.bf16.msra.mxu0 0
    %344 = vmatprep.subr.bf16.mxu0 0
    %345 = vmatpush1.bf16.msra.mxu0 0
    %346 = vmatprep.subr.bf16.mxu0 0
    %347 = vmatpush1.bf16.msra.mxu0 0
    %348 = vmatprep.subr.bf16.mxu0 0
    %349 = vmatpush1.bf16.msra.mxu0 0
    %350 = vmatprep.subr.bf16.mxu0 %v209
    %351 = vmatpush1.bf16.msra.mxu0 %v206
    %352 = vmatprep.subr.bf16.mxu0 0
    %353 = vmatpush2.bf16.msra.mxu0 0
    %354 = vmatprep.subr.bf16.mxu0 0
    %355 = vmatpush2.bf16.msra.mxu0 0
    %356 = vmatprep.subr.bf16.mxu0 0
    %357 = vmatpush2.bf16.msra.mxu0 0
    %358 = vmatprep.subr.bf16.mxu0 0
    %359 = vmatpush2.bf16.msra.mxu0 0
    %360 = vmatprep.subr.bf16.mxu0 0
    %361 = vmatpush2.bf16.msra.mxu0 0
    %362 = vmatprep.subr.bf16.mxu0 0
    %363 = vmatpush2.bf16.msra.mxu0 0
    %364 = vmatprep.subr.bf16.mxu0 0
    %365 = vmatpush2.bf16.msra.mxu0 0
    %366 = vmatprep.subr.bf16.mxu0 0
    %367 = vmatpush2.bf16.msra.mxu0 0
    %368 = vmatprep.mubr.bf16.mxu0 0
    %369 = vmatmul.mubr.bf16.gmra.mxu0 %v175
    %v370 = vpop.f32.mrf.mxu0
    %v371 = vadd.f32 %v72, %v370
    %v372 = vpop.f32.mrf.mxu0
    %v373 = vadd.f32 %v76, %v372
    %v374 = vpop.f32.mrf.mxu0
    %v375 = vadd.f32 %v72, %v374
    %v376 = vpop.f32.mrf.mxu0
    %v377 = vadd.f32 %v76, %v376
    %378 = vmatprep.mubr.bf16.mxu0 0
    %379 = vmatmul.mubr.bf16.gmra.mxu0 %v178
    %v380 = vpop.f32.mrf.mxu0
    %v381 = vadd.f32 %v72, %v380
    %v382 = vpop.f32.mrf.mxu0
    %v383 = vadd.f32 %v76, %v382
    %v384 = vpop.f32.mrf.mxu0
    %v385 = vadd.f32 %v72, %v384
    %v386 = vpop.f32.mrf.mxu0
    %v387 = vadd.f32 %v76, %v386
    %388 = vmatprep.mubr.bf16.mxu0 0
    %389 = vmatmul.mubr.bf16.gmra.mxu0 %v181
    %v390 = vpop.f32.mrf.mxu0
    %v391 = vadd.f32 %v72, %v390
    %v392 = vpop.f32.mrf.mxu0
    %v393 = vadd.f32 %v76, %v392
    %v394 = vpop.f32.mrf.mxu0
    %v395 = vadd.f32 %v72, %v394
    %v396 = vpop.f32.mrf.mxu0
    %v397 = vadd.f32 %v76, %v396
    %398 = vmatprep.mubr.bf16.mxu0 0
    %399 = vmatmul.mubr.bf16.gmra.mxu0 %v184
    %v400 = vpop.f32.mrf.mxu0
    %v401 = vadd.f32 %v72, %v400
    %v402 = vpop.f32.mrf.mxu0
    %v403 = vadd.f32 %v76, %v402
    %v404 = vpop.f32.mrf.mxu0
    %v405 = vadd.f32 %v72, %v404
    %v406 = vpop.f32.mrf.mxu0
    %v407 = vadd.f32 %v76, %v406
    %408 = vmatprep.mubr.bf16.mxu0 0
    %409 = vmatmul.mubr.bf16.gmra.mxu0 %v187
    %v410 = vpop.f32.mrf.mxu0
    %v411 = vadd.f32 %v72, %v410
    %v412 = vpop.f32.mrf.mxu0
    %v413 = vadd.f32 %v76, %v412
    %v414 = vpop.f32.mrf.mxu0
    %v415 = vadd.f32 %v72, %v414
    %v416 = vpop.f32.mrf.mxu0
    %v417 = vadd.f32 %v76, %v416
    %418 = vmatprep.mubr.bf16.mxu0 0
    %419 = vmatmul.mubr.bf16.gmra.mxu0 %v190
    %v420 = vpop.f32.mrf.mxu0
    %v421 = vadd.f32 %v72, %v420
    %v422 = vpop.f32.mrf.mxu0
    %v423 = vadd.f32 %v76, %v422
    %v424 = vpop.f32.mrf.mxu0
    %v425 = vadd.f32 %v72, %v424
    %v426 = vpop.f32.mrf.mxu0
    %v427 = vadd.f32 %v76, %v426
    %428 = vmatprep.mubr.bf16.mxu0 0
    %429 = vmatmul.mubr.bf16.gmra.mxu0 %v193
    %v430 = vpop.f32.mrf.mxu0
    %v431 = vadd.f32 %v72, %v430
    %v432 = vpop.f32.mrf.mxu0
    %v433 = vadd.f32 %v76, %v432
    %v434 = vpop.f32.mrf.mxu0
    %v435 = vadd.f32 %v72, %v434
    %v436 = vpop.f32.mrf.mxu0
    %v437 = vadd.f32 %v76, %v436
    %438 = vmatprep.mubr.bf16.mxu0 0
    %439 = vmatmul.mubr.bf16.gmra.mxu0 %v196
    %v440 = vpop.f32.mrf.mxu0
    %v441 = vadd.f32 %v72, %v440
    %v442 = vpop.f32.mrf.mxu0
    %v443 = vadd.f32 %v76, %v442
    %v444 = vpop.f32.mrf.mxu0
    %v445 = vadd.f32 %v72, %v444
    %v446 = vpop.f32.mrf.mxu0
    %v447 = vadd.f32 %v76, %v446
    %448 = vdwg.mxu0
    %449 = vmatprep.subr.bf16.mxu0 0
    %450 = vmatpush1.bf16.msra.mxu0 0
    %451 = vmatprep.subr.bf16.mxu0 0
    %452 = vmatpush1.bf16.msra.mxu0 0
    %453 = vmatprep.subr.bf16.mxu0 0
    %454 = vmatpush1.bf16.msra.mxu0 0
    %455 = vmatprep.subr.bf16.mxu0 0
    %456 = vmatpush1.bf16.msra.mxu0 0
    %457 = vmatprep.subr.bf16.mxu0 0
    %458 = vmatpush1.bf16.msra.mxu0 0
    %459 = vmatprep.subr.bf16.mxu0 0
    %460 = vmatpush1.bf16.msra.mxu0 0
    %461 = vmatprep.subr.bf16.mxu0 0
    %462 = vmatpush1.bf16.msra.mxu0 0
    %463 = vmatprep.subr.bf16.mxu0 %v215
    %464 = vmatpush1.bf16.msra.mxu0 %v212
    %465 = vmatprep.subr.bf16.mxu0 0
    %466 = vmatpush2.bf16.msra.mxu0 0
    %467 = vmatprep.subr.bf16.mxu0 0
    %468 = vmatpush2.bf16.msra.mxu0 0
    %469 = vmatprep.subr.bf16.mxu0 0
    %470 = vmatpush2.bf16.msra.mxu0 0
    %471 = vmatprep.subr.bf16.mxu0 0
    %472 = vmatpush2.bf16.msra.mxu0 0
    %473 = vmatprep.subr.bf16.mxu0 0
    %474 = vmatpush2.bf16.msra.mxu0 0
    %475 = vmatprep.subr.bf16.mxu0 0
    %476 = vmatpush2.bf16.msra.mxu0 0
    %477 = vmatprep.subr.bf16.mxu0 0
    %478 = vmatpush2.bf16.msra.mxu0 0
    %479 = vmatprep.subr.bf16.mxu0 0
    %480 = vmatpush2.bf16.msra.mxu0 0
    %481 = vmatprep.mubr.bf16.mxu0 0
    %482 = vmatmul.mubr.bf16.gmra.mxu0 %v175
    %v483 = vpop.f32.mrf.mxu0
    %v484 = vadd.f32 %v80, %v483
    %v485 = vpop.f32.mrf.mxu0
    %v486 = vadd.f32 %v84, %v485
    %v487 = vpop.f32.mrf.mxu0
    %v488 = vadd.f32 %v80, %v487
    %v489 = vpop.f32.mrf.mxu0
    %v490 = vadd.f32 %v84, %v489
    %491 = vmatprep.mubr.bf16.mxu0 0
    %492 = vmatmul.mubr.bf16.gmra.mxu0 %v178
    %v493 = vpop.f32.mrf.mxu0
    %v494 = vadd.f32 %v80, %v493
    %v495 = vpop.f32.mrf.mxu0
    %v496 = vadd.f32 %v84, %v495
    %v497 = vpop.f32.mrf.mxu0
    %v498 = vadd.f32 %v80, %v497
    %v499 = vpop.f32.mrf.mxu0
    %v500 = vadd.f32 %v84, %v499
    %501 = vmatprep.mubr.bf16.mxu0 0
    %502 = vmatmul.mubr.bf16.gmra.mxu0 %v181
    %v503 = vpop.f32.mrf.mxu0
    %v504 = vadd.f32 %v80, %v503
    %v505 = vpop.f32.mrf.mxu0
    %v506 = vadd.f32 %v84, %v505
    %v507 = vpop.f32.mrf.mxu0
    %v508 = vadd.f32 %v80, %v507
    %v509 = vpop.f32.mrf.mxu0
    %v510 = vadd.f32 %v84, %v509
    %511 = vmatprep.mubr.bf16.mxu0 0
    %512 = vmatmul.mubr.bf16.gmra.mxu0 %v184
    %v513 = vpop.f32.mrf.mxu0
    %v514 = vadd.f32 %v80, %v513
    %v515 = vpop.f32.mrf.mxu0
    %v516 = vadd.f32 %v84, %v515
    %v517 = vpop.f32.mrf.mxu0
    %v518 = vadd.f32 %v80, %v517
    %v519 = vpop.f32.mrf.mxu0
    %v520 = vadd.f32 %v84, %v519
    %521 = vmatprep.mubr.bf16.mxu0 0
    %522 = vmatmul.mubr.bf16.gmra.mxu0 %v187
    %v523 = vpop.f32.mrf.mxu0
    %v524 = vadd.f32 %v80, %v523
    %v525 = vpop.f32.mrf.mxu0
    %v526 = vadd.f32 %v84, %v525
    %v527 = vpop.f32.mrf.mxu0
    %v528 = vadd.f32 %v80, %v527
    %v529 = vpop.f32.mrf.mxu0
    %v530 = vadd.f32 %v84, %v529
    %531 = vmatprep.mubr.bf16.mxu0 0
    %532 = vmatmul.mubr.bf16.gmra.mxu0 %v190
    %v533 = vpop.f32.mrf.mxu0
    %v534 = vadd.f32 %v80, %v533
    %v535 = vpop.f32.mrf.mxu0
    %v536 = vadd.f32 %v84, %v535
    %v537 = vpop.f32.mrf.mxu0
    %v538 = vadd.f32 %v80, %v537
    %v539 = vpop.f32.mrf.mxu0
    %v540 = vadd.f32 %v84, %v539
    %541 = vmatprep.mubr.bf16.mxu0 0
    %542 = vmatmul.mubr.bf16.gmra.mxu0 %v193
    %v543 = vpop.f32.mrf.mxu0
    %v544 = vadd.f32 %v80, %v543
    %v545 = vpop.f32.mrf.mxu0
    %v546 = vadd.f32 %v84, %v545
    %v547 = vpop.f32.mrf.mxu0
    %v548 = vadd.f32 %v80, %v547
    %v549 = vpop.f32.mrf.mxu0
    %v550 = vadd.f32 %v84, %v549
    %551 = vmatprep.mubr.bf16.mxu0 0
    %552 = vmatmul.mubr.bf16.gmra.mxu0 %v196
    %v553 = vpop.f32.mrf.mxu0
    %v554 = vadd.f32 %v80, %v553
    %v555 = vpop.f32.mrf.mxu0
    %v556 = vadd.f32 %v84, %v555
    %v557 = vpop.f32.mrf.mxu0
    %v558 = vadd.f32 %v80, %v557
    %v559 = vpop.f32.mrf.mxu0
    %v560 = vadd.f32 %v84, %v559
    %561 = vdwg.mxu0
    %562 = vmatprep.subr.bf16.mxu0 0
    %563 = vmatpush1.bf16.msra.mxu0 0
    %564 = vmatprep.subr.bf16.mxu0 0
    %565 = vmatpush1.bf16.msra.mxu0 0
    %566 = vmatprep.subr.bf16.mxu0 0
    %567 = vmatpush1.bf16.msra.mxu0 0
    %568 = vmatprep.subr.bf16.mxu0 0
    %569 = vmatpush1.bf16.msra.mxu0 0
    %570 = vmatprep.subr.bf16.mxu0 0
    %571 = vmatpush1.bf16.msra.mxu0 0
    %572 = vmatprep.subr.bf16.mxu0 0
    %573 = vmatpush1.bf16.msra.mxu0 0
    %574 = vmatprep.subr.bf16.mxu0 0
    %575 = vmatpush1.bf16.msra.mxu0 0
    %576 = vmatprep.subr.bf16.mxu0 %v221
    %577 = vmatpush1.bf16.msra.mxu0 %v218
    %578 = vmatprep.subr.bf16.mxu0 0
    %579 = vmatpush2.bf16.msra.mxu0 0
    %580 = vmatprep.subr.bf16.mxu0 0
    %581 = vmatpush2.bf16.msra.mxu0 0
    %582 = vmatprep.subr.bf16.mxu0 0
    %583 = vmatpush2.bf16.msra.mxu0 0
    %584 = vmatprep.subr.bf16.mxu0 0
    %585 = vmatpush2.bf16.msra.mxu0 0
    %586 = vmatprep.subr.bf16.mxu0 0
    %587 = vmatpush2.bf16.msra.mxu0 0
    %588 = vmatprep.subr.bf16.mxu0 0
    %589 = vmatpush2.bf16.msra.mxu0 0
    %590 = vmatprep.subr.bf16.mxu0 0
    %591 = vmatpush2.bf16.msra.mxu0 0
    %592 = vmatprep.subr.bf16.mxu0 0
    %593 = vmatpush2.bf16.msra.mxu0 0
    %594 = vmatprep.mubr.bf16.mxu0 0
    %595 = vmatmul.mubr.bf16.gmra.mxu0 %v175
    %v596 = vpop.f32.mrf.mxu0
    %v597 = vadd.f32 %v88, %v596
    %v598 = vpop.f32.mrf.mxu0
    %v599 = vadd.f32 %v92, %v598
    %v600 = vpop.f32.mrf.mxu0
    %v601 = vadd.f32 %v88, %v600
    %v602 = vpop.f32.mrf.mxu0
    %v603 = vadd.f32 %v92, %v602
    %604 = vmatprep.mubr.bf16.mxu0 0
    %605 = vmatmul.mubr.bf16.gmra.mxu0 %v178
    %v606 = vpop.f32.mrf.mxu0
    %v607 = vadd.f32 %v88, %v606
    %v608 = vpop.f32.mrf.mxu0
    %v609 = vadd.f32 %v92, %v608
    %v610 = vpop.f32.mrf.mxu0
    %v611 = vadd.f32 %v88, %v610
    %v612 = vpop.f32.mrf.mxu0
    %v613 = vadd.f32 %v92, %v612
    %614 = vmatprep.mubr.bf16.mxu0 0
    %615 = vmatmul.mubr.bf16.gmra.mxu0 %v181
    %v616 = vpop.f32.mrf.mxu0
    %v617 = vadd.f32 %v88, %v616
    %v618 = vpop.f32.mrf.mxu0
    %v619 = vadd.f32 %v92, %v618
    %v620 = vpop.f32.mrf.mxu0
    %v621 = vadd.f32 %v88, %v620
    %v622 = vpop.f32.mrf.mxu0
    %v623 = vadd.f32 %v92, %v622
    %624 = vmatprep.mubr.bf16.mxu0 0
    %625 = vmatmul.mubr.bf16.gmra.mxu0 %v184
    %v626 = vpop.f32.mrf.mxu0
    %v627 = vadd.f32 %v88, %v626
    %v628 = vpop.f32.mrf.mxu0
    %v629 = vadd.f32 %v92, %v628
    %v630 = vpop.f32.mrf.mxu0
    %v631 = vadd.f32 %v88, %v630
    %v632 = vpop.f32.mrf.mxu0
    %v633 = vadd.f32 %v92, %v632
    %634 = vmatprep.mubr.bf16.mxu0 0
    %635 = vmatmul.mubr.bf16.gmra.mxu0 %v187
    %v636 = vpop.f32.mrf.mxu0
    %v637 = vadd.f32 %v88, %v636
    %v638 = vpop.f32.mrf.mxu0
    %v639 = vadd.f32 %v92, %v638
    %v640 = vpop.f32.mrf.mxu0
    %v641 = vadd.f32 %v88, %v640
    %v642 = vpop.f32.mrf.mxu0
    %v643 = vadd.f32 %v92, %v642
    %644 = vmatprep.mubr.bf16.mxu0 0
    %645 = vmatmul.mubr.bf16.gmra.mxu0 %v190
    %v646 = vpop.f32.mrf.mxu0
    %v647 = vadd.f32 %v88, %v646
    %v648 = vpop.f32.mrf.mxu0
    %v649 = vadd.f32 %v92, %v648
    %v650 = vpop.f32.mrf.mxu0
    %v651 = vadd.f32 %v88, %v650
    %v652 = vpop.f32.mrf.mxu0
    %v653 = vadd.f32 %v92, %v652
    %654 = vmatprep.mubr.bf16.mxu0 0
    %655 = vmatmul.mubr.bf16.gmra.mxu0 %v193
    %v656 = vpop.f32.mrf.mxu0
    %v657 = vadd.f32 %v88, %v656
    %v658 = vpop.f32.mrf.mxu0
    %v659 = vadd.f32 %v92, %v658
    %v660 = vpop.f32.mrf.mxu0
    %v661 = vadd.f32 %v88, %v660
    %v662 = vpop.f32.mrf.mxu0
    %v663 = vadd.f32 %v92, %v662
    %664 = vmatprep.mubr.bf16.mxu0 0
    %665 = vmatmul.mubr.bf16.gmra.mxu0 %v196
    %v666 = vpop.f32.mrf.mxu0
    %v667 = vadd.f32 %v88, %v666
    %v668 = vpop.f32.mrf.mxu0
    %v669 = vadd.f32 %v92, %v668
    %v670 = vpop.f32.mrf.mxu0
    %v671 = vadd.f32 %v88, %v670
    %v672 = vpop.f32.mrf.mxu0
    %v673 = vadd.f32 %v92, %v672
    %674 = vdwg.mxu0
    %v675 = vmax.f32 %v258, 0.0
    %v676 = vmax.f32 %v260, 0.0
    %v677 = vmax.f32 %v371, 0.0
    %v678 = vmax.f32 %v373, 0.0
    %v679 = vmax.f32 %v484, 0.0
    %v680 = vmax.f32 %v486, 0.0
    %v681 = vmax.f32 %v597, 0.0
    %v682 = vmax.f32 %v599, 0.0
    %v683 = vmax.f32 %v262, 0.0
    %v684 = vmax.f32 %v264, 0.0
    %v685 = vmax.f32 %v375, 0.0
    %v686 = vmax.f32 %v377, 0.0
    %v687 = vmax.f32 %v488, 0.0
    %v688 = vmax.f32 %v490, 0.0
    %v689 = vmax.f32 %v601, 0.0
    %v690 = vmax.f32 %v603, 0.0
    %v691 = vmax.f32 %v268, 0.0
    %v692 = vmax.f32 %v270, 0.0
    %v693 = vmax.f32 %v381, 0.0
    %v694 = vmax.f32 %v383, 0.0
    %v695 = vmax.f32 %v494, 0.0
    %v696 = vmax.f32 %v496, 0.0
    %v697 = vmax.f32 %v607, 0.0
    %v698 = vmax.f32 %v609, 0.0
    %v699 = vmax.f32 %v272, 0.0
    %v700 = vmax.f32 %v274, 0.0
    %v701 = vmax.f32 %v385, 0.0
    %v702 = vmax.f32 %v387, 0.0
    %v703 = vmax.f32 %v498, 0.0
    %v704 = vmax.f32 %v500, 0.0
    %v705 = vmax.f32 %v611, 0.0
    %v706 = vmax.f32 %v613, 0.0
    %v707 = vmax.f32 %v278, 0.0
    %v708 = vmax.f32 %v280, 0.0
    %v709 = vmax.f32 %v391, 0.0
    %v710 = vmax.f32 %v393, 0.0
    %v711 = vmax.f32 %v504, 0.0
    %v712 = vmax.f32 %v506, 0.0
    %v713 = vmax.f32 %v617, 0.0
    %v714 = vmax.f32 %v619, 0.0
    %v715 = vmax.f32 %v282, 0.0
    %v716 = vmax.f32 %v284, 0.0
    %v717 = vmax.f32 %v395, 0.0
    %v718 = vmax.f32 %v397, 0.0
    %v719 = vmax.f32 %v508, 0.0
    %v720 = vmax.f32 %v510, 0.0
    %v721 = vmax.f32 %v621, 0.0
    %v722 = vmax.f32 %v623, 0.0
    %v723 = vmax.f32 %v288, 0.0
    %v724 = vmax.f32 %v290, 0.0
    %v725 = vmax.f32 %v401, 0.0
    %v726 = vmax.f32 %v403, 0.0
    %v727 = vmax.f32 %v514, 0.0
    %v728 = vmax.f32 %v516, 0.0
    %v729 = vmax.f32 %v627, 0.0
    %v730 = vmax.f32 %v629, 0.0
    %v731 = vmax.f32 %v292, 0.0
    %v732 = vmax.f32 %v294, 0.0
    %v733 = vmax.f32 %v405, 0.0
    %v734 = vmax.f32 %v407, 0.0
    %v735 = vmax.f32 %v518, 0.0
    %v736 = vmax.f32 %v520, 0.0
    %v737 = vmax.f32 %v631, 0.0
    %v738 = vmax.f32 %v633, 0.0
    %v739 = vmax.f32 %v298, 0.0
    %v740 = vmax.f32 %v300, 0.0
    %v741 = vmax.f32 %v411, 0.0
    %v742 = vmax.f32 %v413, 0.0
    %v743 = vmax.f32 %v524, 0.0
    %v744 = vmax.f32 %v526, 0.0
    %v745 = vmax.f32 %v637, 0.0
    %v746 = vmax.f32 %v639, 0.0
    %v747 = vmax.f32 %v302, 0.0
    %v748 = vmax.f32 %v304, 0.0
    %v749 = vmax.f32 %v415, 0.0
    %v750 = vmax.f32 %v417, 0.0
    %v751 = vmax.f32 %v528, 0.0
    %v752 = vmax.f32 %v530, 0.0
    %v753 = vmax.f32 %v641, 0.0
    %v754 = vmax.f32 %v643, 0.0
    %v755 = vmax.f32 %v308, 0.0
    %v756 = vmax.f32 %v310, 0.0
    %v757 = vmax.f32 %v421, 0.0
    %v758 = vmax.f32 %v423, 0.0
    %v759 = vmax.f32 %v534, 0.0
    %v760 = vmax.f32 %v536, 0.0
    %v761 = vmax.f32 %v647, 0.0
    %v762 = vmax.f32 %v649, 0.0
    %v763 = vmax.f32 %v312, 0.0
    %v764 = vmax.f32 %v314, 0.0
    %v765 = vmax.f32 %v425, 0.0
    %v766 = vmax.f32 %v427, 0.0
    %v767 = vmax.f32 %v538, 0.0
    %v768 = vmax.f32 %v540, 0.0
    %v769 = vmax.f32 %v651, 0.0
    %v770 = vmax.f32 %v653, 0.0
    %v771 = vmax.f32 %v318, 0.0
    %v772 = vmax.f32 %v320, 0.0
    %v773 = vmax.f32 %v431, 0.0
    %v774 = vmax.f32 %v433, 0.0
    %v775 = vmax.f32 %v544, 0.0
    %v776 = vmax.f32 %v546, 0.0
    %v777 = vmax.f32 %v657, 0.0
    %v778 = vmax.f32 %v659, 0.0
    %v779 = vmax.f32 %v322, 0.0
    %v780 = vmax.f32 %v324, 0.0
    %v781 = vmax.f32 %v435, 0.0
    %v782 = vmax.f32 %v437, 0.0
    %v783 = vmax.f32 %v548, 0.0
    %v784 = vmax.f32 %v550, 0.0
    %v785 = vmax.f32 %v661, 0.0
    %v786 = vmax.f32 %v663, 0.0
    %v787 = vmax.f32 %v328, 0.0
    %v788 = vmax.f32 %v330, 0.0
    %v789 = vmax.f32 %v441, 0.0
    %v790 = vmax.f32 %v443, 0.0
    %v791 = vmax.f32 %v554, 0.0
    %v792 = vmax.f32 %v556, 0.0
    %v793 = vmax.f32 %v667, 0.0
    %v794 = vmax.f32 %v669, 0.0
    %v795 = vmax.f32 %v332, 0.0
    %v796 = vmax.f32 %v334, 0.0
    %v797 = vmax.f32 %v445, 0.0
    %v798 = vmax.f32 %v447, 0.0
    %v799 = vmax.f32 %v558, 0.0
    %v800 = vmax.f32 %v560, 0.0
    %v801 = vmax.f32 %v671, 0.0
    %v802 = vmax.f32 %v673, 0.0
    %v803 = vld [vmem:[#allocation3] sm:$0xff]
    %v805 = vlaneseq
    %v806 = vshrl.u32 %v805, 7
    %v807 = vsub.s32 0, %v806
    %v808 = vrot.slane %v803, %v807
    %v809 = vlaneseq
    %v810 = vshrl.u32 %v809, 7
    %v811 = vsub.s32 1, %v810
    %v812 = vrot.slane %v803, %v811
    %v813 = vlaneseq
    %v814 = vshrl.u32 %v813, 7
    %v815 = vsub.s32 2, %v814
    %v816 = vrot.slane %v803, %v815
    %v817 = vlaneseq
    %v818 = vshrl.u32 %v817, 7
    %v819 = vsub.s32 3, %v818
    %v820 = vrot.slane %v803, %v819
    %v821 = vlaneseq
    %v822 = vshrl.u32 %v821, 7
    %v823 = vsub.s32 4, %v822
    %v824 = vrot.slane %v803, %v823
    %v825 = vlaneseq
    %v826 = vshrl.u32 %v825, 7
    %v827 = vsub.s32 5, %v826
    %v828 = vrot.slane %v803, %v827
    %v829 = vlaneseq
    %v830 = vshrl.u32 %v829, 7
    %v831 = vsub.s32 6, %v830
    %v832 = vrot.slane %v803, %v831
    %v833 = vlaneseq
    %v834 = vshrl.u32 %v833, 7
    %v835 = vsub.s32 7, %v834
    %v836 = vrot.slane %v803, %v835
    %v845 = vmul.f32 %v675, %v808
    %v846 = vmul.f32 %v676, %v812
    %v847 = vmul.f32 %v677, %v816
    %v848 = vmul.f32 %v678, %v820
    %v849 = vmul.f32 %v679, %v824
    %v850 = vmul.f32 %v680, %v828
    %v851 = vmul.f32 %v681, %v832
    %v852 = vmul.f32 %v682, %v836
    %v853 = vmul.f32 %v683, %v808
    %v854 = vmul.f32 %v684, %v812
    %v855 = vmul.f32 %v685, %v816
    %v856 = vmul.f32 %v686, %v820
    %v857 = vmul.f32 %v687, %v824
    %v858 = vmul.f32 %v688, %v828
    %v859 = vmul.f32 %v689, %v832
    %v860 = vmul.f32 %v690, %v836
    %v861 = vmul.f32 %v691, %v808
    %v862 = vmul.f32 %v692, %v812
    %v863 = vmul.f32 %v693, %v816
    %v864 = vmul.f32 %v694, %v820
    %v865 = vmul.f32 %v695, %v824
    %v866 = vmul.f32 %v696, %v828
    %v867 = vmul.f32 %v697, %v832
    %v868 = vmul.f32 %v698, %v836
    %v869 = vmul.f32 %v699, %v808
    %v870 = vmul.f32 %v700, %v812
    %v871 = vmul.f32 %v701, %v816
    %v872 = vmul.f32 %v702, %v820
    %v873 = vmul.f32 %v703, %v824
    %v874 = vmul.f32 %v704, %v828
    %v875 = vmul.f32 %v705, %v832
    %v876 = vmul.f32 %v706, %v836
    %v877 = vmul.f32 %v707, %v808
    %v878 = vmul.f32 %v708, %v812
    %v879 = vmul.f32 %v709, %v816
    %v880 = vmul.f32 %v710, %v820
    %v881 = vmul.f32 %v711, %v824
    %v882 = vmul.f32 %v712, %v828
    %v883 = vmul.f32 %v713, %v832
    %v884 = vmul.f32 %v714, %v836
    %v885 = vmul.f32 %v715, %v808
    %v886 = vmul.f32 %v716, %v812
    %v887 = vmul.f32 %v717, %v816
    %v888 = vmul.f32 %v718, %v820
    %v889 = vmul.f32 %v719, %v824
    %v890 = vmul.f32 %v720, %v828
    %v891 = vmul.f32 %v721, %v832
    %v892 = vmul.f32 %v722, %v836
    %v893 = vmul.f32 %v723, %v808
    %v894 = vmul.f32 %v724, %v812
    %v895 = vmul.f32 %v725, %v816
    %v896 = vmul.f32 %v726, %v820
    %v897 = vmul.f32 %v727, %v824
    %v898 = vmul.f32 %v728, %v828
    %v899 = vmul.f32 %v729, %v832
    %v900 = vmul.f32 %v730, %v836
    %v901 = vmul.f32 %v731, %v808
    %v902 = vmul.f32 %v732, %v812
    %v903 = vmul.f32 %v733, %v816
    %v904 = vmul.f32 %v734, %v820
    %v905 = vmul.f32 %v735, %v824
    %v906 = vmul.f32 %v736, %v828
    %v907 = vmul.f32 %v737, %v832
    %v908 = vmul.f32 %v738, %v836
    %v909 = vmul.f32 %v739, %v808
    %v910 = vmul.f32 %v740, %v812
    %v911 = vmul.f32 %v741, %v816
    %v912 = vmul.f32 %v742, %v820
    %v913 = vmul.f32 %v743, %v824
    %v914 = vmul.f32 %v744, %v828
    %v915 = vmul.f32 %v745, %v832
    %v916 = vmul.f32 %v746, %v836
    %v917 = vmul.f32 %v747, %v808
    %v918 = vmul.f32 %v748, %v812
    %v919 = vmul.f32 %v749, %v816
    %v920 = vmul.f32 %v750, %v820
    %v921 = vmul.f32 %v751, %v824
    %v922 = vmul.f32 %v752, %v828
    %v923 = vmul.f32 %v753, %v832
    %v924 = vmul.f32 %v754, %v836
    %v925 = vmul.f32 %v755, %v808
    %v926 = vmul.f32 %v756, %v812
    %v927 = vmul.f32 %v757, %v816
    %v928 = vmul.f32 %v758, %v820
    %v929 = vmul.f32 %v759, %v824
    %v930 = vmul.f32 %v760, %v828
    %v931 = vmul.f32 %v761, %v832
    %v932 = vmul.f32 %v762, %v836
    %v933 = vmul.f32 %v763, %v808
    %v934 = vmul.f32 %v764, %v812
    %v935 = vmul.f32 %v765, %v816
    %v936 = vmul.f32 %v766, %v820
    %v937 = vmul.f32 %v767, %v824
    %v938 = vmul.f32 %v768, %v828
    %v939 = vmul.f32 %v769, %v832
    %v940 = vmul.f32 %v770, %v836
    %v941 = vmul.f32 %v771, %v808
    %v942 = vmul.f32 %v772, %v812
    %v943 = vmul.f32 %v773, %v816
    %v944 = vmul.f32 %v774, %v820
    %v945 = vmul.f32 %v775, %v824
    %v946 = vmul.f32 %v776, %v828
    %v947 = vmul.f32 %v777, %v832
    %v948 = vmul.f32 %v778, %v836
    %v949 = vmul.f32 %v779, %v808
    %v950 = vmul.f32 %v780, %v812
    %v951 = vmul.f32 %v781, %v816
    %v952 = vmul.f32 %v782, %v820
    %v953 = vmul.f32 %v783, %v824
    %v954 = vmul.f32 %v784, %v828
    %v955 = vmul.f32 %v785, %v832
    %v956 = vmul.f32 %v786, %v836
    %v957 = vmul.f32 %v787, %v808
    %v958 = vmul.f32 %v788, %v812
    %v959 = vmul.f32 %v789, %v816
    %v960 = vmul.f32 %v790, %v820
    %v961 = vmul.f32 %v791, %v824
    %v962 = vmul.f32 %v792, %v828
    %v963 = vmul.f32 %v793, %v832
    %v964 = vmul.f32 %v794, %v836
    %v965 = vmul.f32 %v795, %v808
    %v966 = vmul.f32 %v796, %v812
    %v967 = vmul.f32 %v797, %v816
    %v968 = vmul.f32 %v798, %v820
    %v969 = vmul.f32 %v799, %v824
    %v970 = vmul.f32 %v800, %v828
    %v971 = vmul.f32 %v801, %v832
    %v972 = vmul.f32 %v802, %v836
    %v973 = vadd.f32 %v845, %v846
    %v974 = vadd.f32 %v973, %v847
    %v975 = vadd.f32 %v974, %v848
    %v976 = vadd.f32 %v975, %v849
    %v977 = vadd.f32 %v976, %v850
    %v978 = vadd.f32 %v977, %v851
    %v979 = vadd.f32 %v978, %v852
    %980 = vadd.xlane.f32.xlu0 %v979
    %v981 = vpop.xlane.xlu0 %980
    %v982 = vadd.f32 %v853, %v854
    %v983 = vadd.f32 %v982, %v855
    %v984 = vadd.f32 %v983, %v856
    %v985 = vadd.f32 %v984, %v857
    %v986 = vadd.f32 %v985, %v858
    %v987 = vadd.f32 %v986, %v859
    %v988 = vadd.f32 %v987, %v860
    %989 = vadd.xlane.f32.xlu0 %v988
    %v990 = vpop.xlane.xlu0 %989
    %v991 = vadd.f32 %v861, %v862
    %v992 = vadd.f32 %v991, %v863
    %v993 = vadd.f32 %v992, %v864
    %v994 = vadd.f32 %v993, %v865
    %v995 = vadd.f32 %v994, %v866
    %v996 = vadd.f32 %v995, %v867
    %v997 = vadd.f32 %v996, %v868
    %998 = vadd.xlane.f32.xlu0 %v997
    %v999 = vpop.xlane.xlu0 %998
    %v1000 = vadd.f32 %v869, %v870
    %v1001 = vadd.f32 %v1000, %v871
    %v1002 = vadd.f32 %v1001, %v872
    %v1003 = vadd.f32 %v1002, %v873
    %v1004 = vadd.f32 %v1003, %v874
    %v1005 = vadd.f32 %v1004, %v875
    %v1006 = vadd.f32 %v1005, %v876
    %1007 = vadd.xlane.f32.xlu0 %v1006
    %v1008 = vpop.xlane.xlu0 %1007
    %v1009 = vadd.f32 %v877, %v878
    %v1010 = vadd.f32 %v1009, %v879
    %v1011 = vadd.f32 %v1010, %v880
    %v1012 = vadd.f32 %v1011, %v881
    %v1013 = vadd.f32 %v1012, %v882
    %v1014 = vadd.f32 %v1013, %v883
    %v1015 = vadd.f32 %v1014, %v884
    %1016 = vadd.xlane.f32.xlu0 %v1015
    %v1017 = vpop.xlane.xlu0 %1016
    %v1018 = vadd.f32 %v885, %v886
    %v1019 = vadd.f32 %v1018, %v887
    %v1020 = vadd.f32 %v1019, %v888
    %v1021 = vadd.f32 %v1020, %v889
    %v1022 = vadd.f32 %v1021, %v890
    %v1023 = vadd.f32 %v1022, %v891
    %v1024 = vadd.f32 %v1023, %v892
    %1025 = vadd.xlane.f32.xlu0 %v1024
    %v1026 = vpop.xlane.xlu0 %1025
    %v1027 = vadd.f32 %v893, %v894
    %v1028 = vadd.f32 %v1027, %v895
    %v1029 = vadd.f32 %v1028, %v896
    %v1030 = vadd.f32 %v1029, %v897
    %v1031 = vadd.f32 %v1030, %v898
    %v1032 = vadd.f32 %v1031, %v899
    %v1033 = vadd.f32 %v1032, %v900
    %1034 = vadd.xlane.f32.xlu0 %v1033
    %v1035 = vpop.xlane.xlu0 %1034
    %v1036 = vadd.f32 %v901, %v902
    %v1037 = vadd.f32 %v1036, %v903
    %v1038 = vadd.f32 %v1037, %v904
    %v1039 = vadd.f32 %v1038, %v905
    %v1040 = vadd.f32 %v1039, %v906
    %v1041 = vadd.f32 %v1040, %v907
    %v1042 = vadd.f32 %v1041, %v908
    %1043 = vadd.xlane.f32.xlu0 %v1042
    %v1044 = vpop.xlane.xlu0 %1043
    %v1045 = vadd.f32 %v909, %v910
    %v1046 = vadd.f32 %v1045, %v911
    %v1047 = vadd.f32 %v1046, %v912
    %v1048 = vadd.f32 %v1047, %v913
    %v1049 = vadd.f32 %v1048, %v914
    %v1050 = vadd.f32 %v1049, %v915
    %v1051 = vadd.f32 %v1050, %v916
    %1052 = vadd.xlane.f32.xlu0 %v1051
    %v1053 = vpop.xlane.xlu0 %1052
    %v1054 = vadd.f32 %v917, %v918
    %v1055 = vadd.f32 %v1054, %v919
    %v1056 = vadd.f32 %v1055, %v920
    %v1057 = vadd.f32 %v1056, %v921
    %v1058 = vadd.f32 %v1057, %v922
    %v1059 = vadd.f32 %v1058, %v923
    %v1060 = vadd.f32 %v1059, %v924
    %1061 = vadd.xlane.f32.xlu0 %v1060
    %v1062 = vpop.xlane.xlu0 %1061
    %v1063 = vadd.f32 %v925, %v926
    %v1064 = vadd.f32 %v1063, %v927
    %v1065 = vadd.f32 %v1064, %v928
    %v1066 = vadd.f32 %v1065, %v929
    %v1067 = vadd.f32 %v1066, %v930
    %v1068 = vadd.f32 %v1067, %v931
    %v1069 = vadd.f32 %v1068, %v932
    %1070 = vadd.xlane.f32.xlu0 %v1069
    %v1071 = vpop.xlane.xlu0 %1070
    %v1072 = vadd.f32 %v933, %v934
    %v1073 = vadd.f32 %v1072, %v935
    %v1074 = vadd.f32 %v1073, %v936
    %v1075 = vadd.f32 %v1074, %v937
    %v1076 = vadd.f32 %v1075, %v938
    %v1077 = vadd.f32 %v1076, %v939
    %v1078 = vadd.f32 %v1077, %v940
    %1079 = vadd.xlane.f32.xlu0 %v1078
    %v1080 = vpop.xlane.xlu0 %1079
    %v1081 = vadd.f32 %v941, %v942
    %v1082 = vadd.f32 %v1081, %v943
    %v1083 = vadd.f32 %v1082, %v944
    %v1084 = vadd.f32 %v1083, %v945
    %v1085 = vadd.f32 %v1084, %v946
    %v1086 = vadd.f32 %v1085, %v947
    %v1087 = vadd.f32 %v1086, %v948
    %1088 = vadd.xlane.f32.xlu0 %v1087
    %v1089 = vpop.xlane.xlu0 %1088
    %v1090 = vadd.f32 %v949, %v950
    %v1091 = vadd.f32 %v1090, %v951
    %v1092 = vadd.f32 %v1091, %v952
    %v1093 = vadd.f32 %v1092, %v953
    %v1094 = vadd.f32 %v1093, %v954
    %v1095 = vadd.f32 %v1094, %v955
    %v1096 = vadd.f32 %v1095, %v956
    %1097 = vadd.xlane.f32.xlu0 %v1096
    %v1098 = vpop.xlane.xlu0 %1097
    %v1099 = vadd.f32 %v957, %v958
    %v1100 = vadd.f32 %v1099, %v959
    %v1101 = vadd.f32 %v1100, %v960
    %v1102 = vadd.f32 %v1101, %v961
    %v1103 = vadd.f32 %v1102, %v962
    %v1104 = vadd.f32 %v1103, %v963
    %v1105 = vadd.f32 %v1104, %v964
    %1106 = vadd.xlane.f32.xlu0 %v1105
    %v1107 = vpop.xlane.xlu0 %1106
    %v1108 = vadd.f32 %v965, %v966
    %v1109 = vadd.f32 %v1108, %v967
    %v1110 = vadd.f32 %v1109, %v968
    %v1111 = vadd.f32 %v1110, %v969
    %v1112 = vadd.f32 %v1111, %v970
    %v1113 = vadd.f32 %v1112, %v971
    %v1114 = vadd.f32 %v1113, %v972
    %1115 = vadd.xlane.f32.xlu0 %v1114
    %v1116 = vpop.xlane.xlu0 %1115
    %s1117 = sld [smem:[#allocation2]]
    %v1118 = vstv %s1117
    %v1119 = vadd.f32 %v981, %v1118
    %v1120 = vadd.f32 %v990, %v1118
    %v1121 = vadd.f32 %v999, %v1118
    %v1122 = vadd.f32 %v1008, %v1118
    %v1123 = vadd.f32 %v1017, %v1118
    %v1124 = vadd.f32 %v1026, %v1118
    %v1125 = vadd.f32 %v1035, %v1118
    %v1126 = vadd.f32 %v1044, %v1118
    %v1127 = vadd.f32 %v1053, %v1118
    %v1128 = vadd.f32 %v1062, %v1118
    %v1129 = vadd.f32 %v1071, %v1118
    %v1130 = vadd.f32 %v1080, %v1118
    %v1131 = vadd.f32 %v1089, %v1118
    %v1132 = vadd.f32 %v1098, %v1118
    %v1133 = vadd.f32 %v1107, %v1118
    %v1134 = vadd.f32 %v1116, %v1118
    %v1151 = vlaneseq
    %v1152 = vand.u32 %v1151, 127
    %v1153 = vlaneseq
    %v1154 = vshrl.u32 %v1153, 7
    %v1155 = vsub.s32 %v1152, %v1154
    %v1156 = vrot.slane %v1119, %v1155
    %v1157 = vadd.s32 %v1152, 4294967288
    %v1158 = vlaneseq
    %v1159 = vshrl.u32 %v1158, 7
    %v1160 = vsub.s32 %v1157, %v1159
    %v1161 = vrot.slane %v1120, %v1160
    %vm1162 = vcmask 130112
    %v1163 = vsel %vm1162, %v1161, %v1156
    %v1164 = vadd.s32 %v1152, 4294967280
    %v1165 = vlaneseq
    %v1166 = vshrl.u32 %v1165, 7
    %v1167 = vsub.s32 %v1164, %v1166
    %v1168 = vrot.slane %v1121, %v1167
    %vm1169 = vcmask 195712
    %v1170 = vsel %vm1169, %v1168, %v1163
    %v1171 = vadd.s32 %v1152, 4294967272
    %v1172 = vlaneseq
    %v1173 = vshrl.u32 %v1172, 7
    %v1174 = vsub.s32 %v1171, %v1173
    %v1175 = vrot.slane %v1122, %v1174
    %vm1176 = vcmask 261312
    %v1177 = vsel %vm1176, %v1175, %v1170
    %v1178 = vadd.s32 %v1152, 4294967264
    %v1179 = vlaneseq
    %v1180 = vshrl.u32 %v1179, 7
    %v1181 = vsub.s32 %v1178, %v1180
    %v1182 = vrot.slane %v1123, %v1181
    %vm1183 = vcmask 326912
    %v1184 = vsel %vm1183, %v1182, %v1177
    %v1185 = vadd.s32 %v1152, 4294967256
    %v1186 = vlaneseq
    %v1187 = vshrl.u32 %v1186, 7
    %v1188 = vsub.s32 %v1185, %v1187
    %v1189 = vrot.slane %v1124, %v1188
    %vm1190 = vcmask 392512
    %v1191 = vsel %vm1190, %v1189, %v1184
    %v1192 = vadd.s32 %v1152, 4294967248
    %v1193 = vlaneseq
    %v1194 = vshrl.u32 %v1193, 7
    %v1195 = vsub.s32 %v1192, %v1194
    %v1196 = vrot.slane %v1125, %v1195
    %vm1197 = vcmask 458112
    %v1198 = vsel %vm1197, %v1196, %v1191
    %v1199 = vadd.s32 %v1152, 4294967240
    %v1200 = vlaneseq
    %v1201 = vshrl.u32 %v1200, 7
    %v1202 = vsub.s32 %v1199, %v1201
    %v1203 = vrot.slane %v1126, %v1202
    %vm1204 = vcmask 523712
    %v1205 = vsel %vm1204, %v1203, %v1198
    %v1206 = vadd.s32 %v1152, 4294967232
    %v1207 = vlaneseq
    %v1208 = vshrl.u32 %v1207, 7
    %v1209 = vsub.s32 %v1206, %v1208
    %v1210 = vrot.slane %v1127, %v1209
    %vm1211 = vcmask 589312
    %v1212 = vsel %vm1211, %v1210, %v1205
    %v1213 = vadd.s32 %v1152, 4294967224
    %v1214 = vlaneseq
    %v1215 = vshrl.u32 %v1214, 7
    %v1216 = vsub.s32 %v1213, %v1215
    %v1217 = vrot.slane %v1128, %v1216
    %vm1218 = vcmask 654912
    %v1219 = vsel %vm1218, %v1217, %v1212
    %v1220 = vadd.s32 %v1152, 4294967216
    %v1221 = vlaneseq
    %v1222 = vshrl.u32 %v1221, 7
    %v1223 = vsub.s32 %v1220, %v1222
    %v1224 = vrot.slane %v1129, %v1223
    %vm1225 = vcmask 720512
    %v1226 = vsel %vm1225, %v1224, %v1219
    %v1227 = vadd.s32 %v1152, 4294967208
    %v1228 = vlaneseq
    %v1229 = vshrl.u32 %v1228, 7
    %v1230 = vsub.s32 %v1227, %v1229
    %v1231 = vrot.slane %v1130, %v1230
    %vm1232 = vcmask 786112
    %v1233 = vsel %vm1232, %v1231, %v1226
    %v1234 = vadd.s32 %v1152, 4294967200
    %v1235 = vlaneseq
    %v1236 = vshrl.u32 %v1235, 7
    %v1237 = vsub.s32 %v1234, %v1236
    %v1238 = vrot.slane %v1131, %v1237
    %vm1239 = vcmask 851712
    %v1240 = vsel %vm1239, %v1238, %v1233
    %v1241 = vadd.s32 %v1152, 4294967192
    %v1242 = vlaneseq
    %v1243 = vshrl.u32 %v1242, 7
    %v1244 = vsub.s32 %v1241, %v1243
    %v1245 = vrot.slane %v1132, %v1244
    %vm1246 = vcmask 917312
    %v1247 = vsel %vm1246, %v1245, %v1240
    %v1248 = vadd.s32 %v1152, 4294967184
    %v1249 = vlaneseq
    %v1250 = vshrl.u32 %v1249, 7
    %v1251 = vsub.s32 %v1248, %v1250
    %v1252 = vrot.slane %v1133, %v1251
    %vm1253 = vcmask 982912
    %v1254 = vsel %vm1253, %v1252, %v1247
    %v1255 = vadd.s32 %v1152, 4294967176
    %v1256 = vlaneseq
    %v1257 = vshrl.u32 %v1256, 7
    %v1258 = vsub.s32 %v1255, %v1257
    %v1259 = vrot.slane %v1134, %v1258
    %vm1260 = vcmask 1048512
    %v1261 = vsel %vm1260, %v1259, %v1254
    %1263 = vst [vmem:[#allocation6] sm:$0x1] %v1261
    // Predicated region
    $region26: #{tpu_custom_call.1} parent=1 // pred_check
      _
    $region27: #{tpu_custom_call.1} parent=1 // pred_check_branch
      %1265 = sbr.rel (0) target = $region29
    $region28: #{tpu_custom_call.1} parent=1 // pred_region
      %s1267 = ssub.s32 16, 16
      %1268 = vsyncadd [#allocation5], %s1267
      %s1270 = sshll.u32 [#allocation6], 4
      %s1271 = int_to_ptr.vmem [resolvable:$true] %s1270
      %1273 = dma.vmem_to_hbm [thread:$0]  %s1271, 16, %s5, [#allocation5]
    $region29: #{tpu_custom_call.1} parent=1 // pred_fallthru
      _
    // Predicated region
    $region30: #{tpu_custom_call.1} parent=1 // pred_check
      _
    $region31: #{tpu_custom_call.1} parent=1 // pred_check_branch
      %1275 = sbr.rel (0) target = $region33
    $region32: #{tpu_custom_call.1} parent=1 // pred_region
      %1276 = dma.done [#allocation5], 16
    $region33: #{tpu_custom_call.1} parent=1 // pred_fallthru
      _
    %1277 = vsyncpa [#allocation4], 1
    %1278 = vsyncpa [#allocation5], 1

</llo_original>
